<compile_context>
chip_gen: v5e
topology: v5e:2x2
jax: 0.10.0
libtpu: 0.0.40
codegen_flags: <defaults>
</compile_context>

<pallas_src>
import functools

import jax
import jax.numpy as jnp
from jax import lax
from jax.experimental import pallas as pl
from jax.experimental.pallas import tpu as pltpu

LN_EPS = 1e-5
# Conservative scoped-VMEM request that is safe on v5e/v6e (128 MiB physical)
# and v7x (64 MiB physical per TensorCore).
VMEM_LIMIT_BYTES = 48 * 1024 * 1024


# ---------------------------------------------------------------------------
# Kernels
# ---------------------------------------------------------------------------
def single_adapter_kernel(x_ref, wd_ref, bd_ref, wu_ref, bu_ref, o_ref, *,
                          mxu_dtype):
  """forward(x, adapter_id=k): one bottleneck adapter on a token tile.

  LayerNorm affine (gamma/beta) is pre-folded into wd/bd by the wrapper.
  """
  x = x_ref[...].astype(jnp.float32)                       # (TM, D)
  mu = jnp.mean(x, axis=-1, keepdims=True)
  var = jnp.mean((x - mu) * (x - mu), axis=-1, keepdims=True)
  xhat = (x - mu) * lax.rsqrt(var + LN_EPS)

  h = jnp.dot(xhat.astype(mxu_dtype), wd_ref[...],
              preferred_element_type=jnp.float32) + bd_ref[...]
  h = jnp.maximum(h, 0.0)
  up = jnp.dot(h.astype(mxu_dtype), wu_ref[...],
               preferred_element_type=jnp.float32)
  o_ref[...] = (x + up + bu_ref[...]).astype(o_ref.dtype)


def moa_fusion_kernel(*refs, num_adapter, bottleneck, fusion_type, res_coef,
                      mxu_dtype):
  """Fusion over all adapters for one token tile, with the A adapters
  concatenated into two large matmuls.

  Inputs (prepared by the wrapper):
    wd_ref : (D, A*Bn)   gamma-folded down projections, concatenated over A
    bd_ref : (1, A*Bn)   beta-folded down biases
    wu_ref : (A*Bn, D)   up projections (scaled by 1/A for 'mean')
    bu_ref : (1, D) for 'add'/'mean' (summed / averaged), (A, D) for 'gate'
    wg_ref : (D, A)      gate linear ('gate' only)
    bg_ref : (1, A)      gate bias   ('gate' only)
  """
  if fusion_type == 'gate':
    x_ref, wd_ref, bd_ref, wu_ref, bu_ref, wg_ref, bg_ref, o_ref = refs
  else:
    x_ref, wd_ref, bd_ref, wu_ref, bu_ref, o_ref = refs

  x = x_ref[...].astype(jnp.float32)                       # (TM, D)

  # --- LayerNorm statistics computed ONCE per tile (affine folded into wd/bd)
  mu = jnp.mean(x, axis=-1, keepdims=True)
  var = jnp.mean((x - mu) * (x - mu), axis=-1, keepdims=True)
  xhat = (x - mu) * lax.rsqrt(var + LN_EPS)

  # --- one concatenated down projection for all adapters: (TM, D) x (D, A*Bn)
  h = jnp.dot(xhat.astype(mxu_dtype), wd_ref[...],
              preferred_element_type=jnp.float32) + bd_ref[...]
  h = jnp.maximum(h, 0.0)                                  # (TM, A*Bn)

  if fusion_type == 'gate':
    # softmax gate computed from the raw (un-normalized) input, as in PyTorch.
    logits = jnp.dot(x, wg_ref[...],
                     preferred_element_type=jnp.float32) + bg_ref[...]
    logits = logits - jnp.max(logits, axis=-1, keepdims=True)
    p = jnp.exp(logits)
    gate_w = p * pl.reciprocal(jnp.sum(p, axis=-1, keepdims=True),
                               approx=True)                # (TM, A)

    # Expand gate_w to the (TM, A*Bn) layout without reshaping h (stays lane
    # dense), and accumulate the gated up-bias  sum_a g_a * b_up_a.
    col = lax.broadcasted_iota(jnp.int32, h.shape, 1) // bottleneck
    scale = jnp.zeros_like(h)
    bias = jnp.zeros_like(x)
    bu_all = bu_ref[...]                                   # (A, D)
    for a in range(num_adapter):                           # A is small & static
      gw_a = gate_w[:, a:a + 1]                            # (TM, 1)
      scale = jnp.where(col == a, gw_a, scale)
      bias = bias + gw_a * bu_all[a:a + 1, :]
    h = h * scale
    res = x                                                # softmax sums to 1
  else:
    bias = bu_ref[...]                                     # (1, D)
    res = res_coef * x if res_coef != 1.0 else x

  # --- one concatenated up projection: (TM, A*Bn) x (A*Bn, D)
  up = jnp.dot(h.astype(mxu_dtype), wu_ref[...],
               preferred_element_type=jnp.float32)
  o_ref[...] = (res + up + bias).astype(o_ref.dtype)


# ---------------------------------------------------------------------------
# Wrappers
# ---------------------------------------------------------------------------
def _full_spec(shape):
  nd = len(shape)
  return pl.BlockSpec(shape, lambda i, _nd=nd: (0,) * _nd)


def _choose_tm(T, D, weight_bytes, vmem_limit_bytes):
  """Largest token tile (multiple of 8, dividing T) that fits the VMEM budget.

  Budget ~= 2 double-buffered (tm, D) f32 streams (x in, out) plus a few
  (tm, D)-sized f32 intermediates, plus the (double-buffered) grid-invariant
  weights.
  """
  usable = int(0.7 * vmem_limit_bytes) - 2 * weight_bytes
  per_row = 7 * D * 4
  tm = max(8, usable // max(per_row, 1))
  tm = min(int(tm), T)
  tm -= tm % 8
  tm = max(tm, 8)
  while tm > 8 and T % tm:
    tm -= 8
  # v7x megacore: keep >= 2 grid steps when possible so both TCs get work.
  if T // tm < 2 and tm >= 16 and (tm // 2) % 8 == 0 and T % (tm // 2) == 0:
    tm //= 2
  return tm


def _prep_fusion_params(params, fusion_type, mxu_dtype):
  """Fold LN affine into the down projection and concatenate the A adapters."""
  gamma = params['ln_gamma']                               # (A, D)
  beta = params['ln_beta']                                 # (A, D)
  wd = params['w_down']                                    # (A, D, Bn)
  bd = params['b_down']                                    # (A, Bn)
  wu = params['w_up']                                      # (A, Bn, D)
  bu = params['b_up']                                      # (A, D)
  A, D, Bn = wd.shape

  wd_f = gamma[:, :, None] * wd                            # fold gamma
  bd_f = bd + jnp.einsum('ad,adb->ab', beta, wd)           # fold beta
  wd_cat = jnp.transpose(wd_f, (1, 0, 2)).reshape(D, A * Bn)
  bd_cat = bd_f.reshape(1, A * Bn).astype(jnp.float32)
  wu_cat = wu.reshape(A * Bn, D)

  if fusion_type == 'mean':
    wu_cat = wu_cat / A                                    # fold 1/A
    bu_out = jnp.mean(bu, axis=0, keepdims=True).astype(jnp.float32)
    res_coef = 1.0
  elif fusion_type == 'add':
    bu_out = jnp.sum(bu, axis=0, keepdims=True).astype(jnp.float32)
    res_coef = float(A)
  elif fusion_type == 'gate':
    bu_out = bu.astype(jnp.float32)                        # (A, D)
    res_coef = 1.0
  else:
    raise NotImplementedError(f'fusion_type={fusion_type!r} not supported')

  return (wd_cat.astype(mxu_dtype), bd_cat, wu_cat.astype(mxu_dtype),
          bu_out, res_coef, A, Bn)


def moa_layer_forward(x, params, adapter_id=-1, fusion=False,
                      fusion_type='gate', tm=None, mxu_dtype=jnp.bfloat16):
  """Pallas implementation of MoALayer.forward.

  x: (seq_len, batch, embed_dim) float32
  """
  if adapter_id >= 0 and fusion:
    raise ValueError('adapter_id and fusion cannot be specified at the same time.')
  if adapter_id < 0 and not fusion:
    return x

  S, B, D = x.shape
  T = S * B
  assert T % 8 == 0, 'token count (seq_len * batch) must be a multiple of 8'
  # Production note: D should be a multiple of 128 for lane-dense stores.
  x_flat = x.reshape(T, D)

  if adapter_id >= 0:
    g = params['ln_gamma'][adapter_id]
    be = params['ln_beta'][adapter_id]
    wd0 = params['w_down'][adapter_id]                     # (D, Bn)
    wd = (g[:, None] * wd0).astype(mxu_dtype)
    bd = (params['b_down'][adapter_id] + be @ wd0)[None, :].astype(jnp.float32)
    wu = params['w_up'][adapter_id].astype(mxu_dtype)      # (Bn, D)
    bu = params['b_up'][adapter_id][None, :].astype(jnp.float32)
    args = (x_flat, wd, bd, wu, bu)
    kern = functools.partial(single_adapter_kernel, mxu_dtype=mxu_dtype)
  else:
    wd_cat, bd_cat, wu_cat, bu_out, res_coef, A, Bn = _prep_fusion_params(
        params, fusion_type, mxu_dtype)
    if fusion_type == 'gate':
      wg = params['w_gate'].astype(jnp.float32)            # (D, A)
      bg = params['b_gate'][None, :].astype(jnp.float32)   # (1, A)
      args = (x_flat, wd_cat, bd_cat, wu_cat, bu_out, wg, bg)
    else:
      args = (x_flat, wd_cat, bd_cat, wu_cat, bu_out)
    kern = functools.partial(moa_fusion_kernel, num_adapter=A, bottleneck=Bn,
                             fusion_type=fusion_type, res_coef=res_coef,
                             mxu_dtype=mxu_dtype)

  weight_bytes = sum(int(a.size) * a.dtype.itemsize for a in args[1:])
  if tm is None:
    tm = _choose_tm(T, D, weight_bytes, VMEM_LIMIT_BYTES)
  assert T % tm == 0 and tm % 8 == 0

  grid = (T // tm,)
  x_spec = pl.BlockSpec((tm, D), lambda i: (i, 0))
  out_spec = pl.BlockSpec((tm, D), lambda i: (i, 0))
  in_specs = [x_spec] + [_full_spec(a.shape) for a in args[1:]]

  out = pl.pallas_call(
      kern,
      grid=grid,
      in_specs=in_specs,
      out_specs=out_spec,
      out_shape=jax.ShapeDtypeStruct((T, D), x.dtype),
      compiler_params=pltpu.CompilerParams(
          dimension_semantics=("parallel",),
          vmem_limit_bytes=VMEM_LIMIT_BYTES),
  )(*args)
  return out.reshape(S, B, D)


# ---------------------------------------------------------------------------
# Pure-JAX reference (for verification)
# ---------------------------------------------------------------------------
def _adapter_ref(x, g, b, wd, bd, wu, bu):
  mu = jnp.mean(x, axis=-1, keepdims=True)
  var = jnp.mean((x - mu) ** 2, axis=-1, keepdims=True)
  xn = (x - mu) / jnp.sqrt(var + LN_EPS) * g + b
  h = jnp.maximum(xn @ wd + bd, 0.0)
  return h @ wu + bu + x


def moa_ref(x, params, adapter_id=-1, fusion=False, fusion_type='gate'):
  if adapter_id >= 0:
    return _adapter_ref(x, params['ln_gamma'][adapter_id],
                        params['ln_beta'][adapter_id],
                        params['w_down'][adapter_id],
                        params['b_down'][adapter_id],
                        params['w_up'][adapter_id],
                        params['b_up'][adapter_id])
  if not fusion:
    return x
  A = params['ln_gamma'].shape[0]
  outs = jnp.stack([
      _adapter_ref(x, params['ln_gamma'][a], params['ln_beta'][a],
                   params['w_down'][a], params['b_down'][a],
                   params['w_up'][a], params['b_up'][a]) for a in range(A)
  ], axis=0)                                               # (A, S, B, D)
  if fusion_type == 'add':
    return jnp.sum(outs, axis=0)
  if fusion_type == 'mean':
    return jnp.mean(outs, axis=0)
  # gate
  gv = x @ params['w_gate'] + params['b_gate']             # (S, B, A)
  gw = jax.nn.softmax(gv, axis=-1)
  gw = jnp.moveaxis(gw, -1, 0)[..., None]                  # (A, S, B, 1)
  return jnp.sum(outs * gw, axis=0)


# ---------------------------------------------------------------------------
# Main
# ---------------------------------------------------------------------------
if __name__ == "__main__":
  SEQ, BATCH, DIM = 8, 2, 128       # (seq_len, batch_size, embed_dim)
  NUM_ADAPTER, BOTTLENECK = 4, 32   # A * Bn = 128 -> lane-dense intermediates

  key = jax.random.PRNGKey(0)
  ks = jax.random.split(key, 8)

  params = {
      'ln_gamma': jnp.ones((NUM_ADAPTER, DIM), jnp.float32),
      'ln_beta': jnp.zeros((NUM_ADAPTER, DIM), jnp.float32),
      'w_down': 0.1 * jax.random.normal(ks[0], (NUM_ADAPTER, DIM, BOTTLENECK),
                                        jnp.float32),
      'b_down': 0.01 * jax.random.normal(ks[1], (NUM_ADAPTER, BOTTLENECK),
                                         jnp.float32),
      'w_up': 0.1 * jax.random.normal(ks[2], (NUM_ADAPTER, BOTTLENECK, DIM),
                                      jnp.float32),
      'b_up': 0.01 * jax.random.normal(ks[3], (NUM_ADAPTER, DIM), jnp.float32),
      'w_gate': 0.1 * jax.random.normal(ks[4], (DIM, NUM_ADAPTER), jnp.float32),
      'b_gate': 0.01 * jax.random.normal(ks[5], (NUM_ADAPTER,), jnp.float32),
  }
  x = jax.random.normal(ks[6], (SEQ, BATCH, DIM), jnp.float32)

  # 1) identity path (adapter_id < 0, fusion=False)
  out_id = moa_layer_forward(x, params, adapter_id=-1, fusion=False)

  # 2) full-precision MXU path: tight correctness checks
  out_a2 = moa_layer_forward(x, params, adapter_id=2, mxu_dtype=jnp.float32)
  out_gate = moa_layer_forward(x, params, fusion=True, fusion_type='gate',
                               mxu_dtype=jnp.float32)
  out_mean = moa_layer_forward(x, params, fusion=True, fusion_type='mean',
                               mxu_dtype=jnp.float32)
  out_add = moa_layer_forward(x, params, fusion=True, fusion_type='add',
                              mxu_dtype=jnp.float32)

  # 3) performance-default bf16-MXU path: loose sanity checks
  out_gate_bf16 = moa_layer_forward(x, params, fusion=True, fusion_type='gate')
  out_mean_bf16 = moa_layer_forward(x, params, fusion=True, fusion_type='mean')

  jax.block_until_ready((out_id, out_a2, out_gate, out_mean, out_add,
                         out_gate_bf16, out_mean_bf16))

  # verify against a pure-JAX reference
  assert jnp.allclose(out_id, x)
  assert jnp.allclose(out_a2, moa_ref(x, params, adapter_id=2),
                      atol=1e-4, rtol=1e-4)
  assert jnp.allclose(out_mean, moa_ref(x, params, fusion=True,
                                        fusion_type='mean'),
                      atol=1e-4, rtol=1e-4)
  assert jnp.allclose(out_add, moa_ref(x, params, fusion=True,
                                       fusion_type='add'),
                      atol=1e-4, rtol=1e-4)
  # gate path uses approx reciprocal for the softmax denominator
  assert jnp.allclose(out_gate, moa_ref(x, params, fusion=True,
                                        fusion_type='gate'),
                      atol=1e-2, rtol=1e-2)
  # bf16 MXU inputs -> loosened tolerances
  assert jnp.allclose(out_gate_bf16, moa_ref(x, params, fusion=True,
                                             fusion_type='gate'),
                      atol=5e-2, rtol=5e-2)
  assert jnp.allclose(out_mean_bf16, moa_ref(x, params, fusion=True,
                                             fusion_type='mean'),
                      atol=5e-2, rtol=5e-2)

  print("KERNEL_OK")
</pallas_src>

<mosaic_0001>
module attributes {stable_mosaic.version = 11 : i64} {
  func.func @single_adapter_kernel(%arg0: i32, %arg1: memref<8x128xf32, #tpu.memory_space<vmem>>, %arg2: memref<128x32xf32, #tpu.memory_space<vmem>>, %arg3: memref<1x32xf32, #tpu.memory_space<vmem>>, %arg4: memref<32x128xf32, #tpu.memory_space<vmem>>, %arg5: memref<1x128xf32, #tpu.memory_space<vmem>>, %arg6: memref<8x128xf32, #tpu.memory_space<vmem>>) attributes {dimension_semantics = [#tpu.dimension_semantics<parallel>], iteration_bounds = array<i64: 2>, scalar_prefetch = 0 : i64, scratch_operands = 0 : i64, tpu.core_type = #tpu.core_type<tc>, window_params = [{transform_indices = @transform_0, window_bounds = array<i64: 8, 128>}, {pipeline_mode = #tpu.pipeline_mode<synchronous>, transform_indices = @transform_1, window_bounds = array<i64: 128, 32>}, {pipeline_mode = #tpu.pipeline_mode<synchronous>, transform_indices = @transform_2, window_bounds = array<i64: 1, 32>}, {pipeline_mode = #tpu.pipeline_mode<synchronous>, transform_indices = @transform_3, window_bounds = array<i64: 32, 128>}, {pipeline_mode = #tpu.pipeline_mode<synchronous>, transform_indices = @transform_4, window_bounds = array<i64: 1, 128>}, {transform_indices = @transform_5, window_bounds = array<i64: 8, 128>}]} {
    %c0 = arith.constant 0 : index
    %c0_0 = arith.constant 0 : index
    %0 = vector.load %arg1[%c0, %c0_0] : memref<8x128xf32, #tpu.memory_space<vmem>>, vector<8x128xf32>
    %cst = arith.constant dense<0.000000e+00> : vector<8xf32>
    %1 = vector.multi_reduction <add>, %0, %cst [1] : vector<8x128xf32> to vector<8xf32>
    %2 = vector.shape_cast %1 : vector<8xf32> to vector<8x1xf32>
    %cst_1 = arith.constant 1.280000e+02 : f32
    %3 = vector.broadcast %cst_1 : f32 to vector<8x1xf32>
    %4 = arith.divf %2, %3 : vector<8x1xf32>
    %5 = vector.broadcast %4 : vector<8x1xf32> to vector<8x128xf32>
    %6 = arith.subf %0, %5 : vector<8x128xf32>
    %7 = vector.broadcast %4 : vector<8x1xf32> to vector<8x128xf32>
    %8 = arith.subf %0, %7 : vector<8x128xf32>
    %9 = arith.mulf %6, %8 : vector<8x128xf32>
    %cst_2 = arith.constant dense<0.000000e+00> : vector<8xf32>
    %10 = vector.multi_reduction <add>, %9, %cst_2 [1] : vector<8x128xf32> to vector<8xf32>
    %11 = vector.shape_cast %10 : vector<8xf32> to vector<8x1xf32>
    %cst_3 = arith.constant 1.280000e+02 : f32
    %12 = vector.broadcast %cst_3 : f32 to vector<8x1xf32>
    %13 = arith.divf %11, %12 : vector<8x1xf32>
    %14 = vector.broadcast %4 : vector<8x1xf32> to vector<8x128xf32>
    %15 = arith.subf %0, %14 : vector<8x128xf32>
    %cst_4 = arith.constant 9.99999974E-6 : f32
    %16 = vector.broadcast %cst_4 : f32 to vector<8x1xf32>
    %17 = arith.addf %13, %16 : vector<8x1xf32>
    %18 = math.rsqrt %17 : vector<8x1xf32>
    %19 = vector.broadcast %18 : vector<8x1xf32> to vector<8x128xf32>
    %20 = arith.mulf %15, %19 : vector<8x128xf32>
    %c0_5 = arith.constant 0 : index
    %c0_6 = arith.constant 0 : index
    %21 = vector.load %arg2[%c0_5, %c0_6] : memref<128x32xf32, #tpu.memory_space<vmem>>, vector<128x32xf32>
    %cst_7 = arith.constant dense<0.000000e+00> : vector<8x32xf32>
    %22 = tpu.matmul %20, %21, %cst_7 {dimension_numbers = #tpu.dot_dimension_numbers<[1], [0], [0], [1], [0, 0, 1, 1], [], []>} : vector<8x128xf32>, vector<128x32xf32>, vector<8x32xf32> -> vector<8x32xf32>
    %c0_8 = arith.constant 0 : index
    %c0_9 = arith.constant 0 : index
    %23 = vector.load %arg3[%c0_8, %c0_9] : memref<1x32xf32, #tpu.memory_space<vmem>>, vector<1x32xf32>
    %24 = vector.broadcast %23 : vector<1x32xf32> to vector<8x32xf32>
    %25 = arith.addf %22, %24 : vector<8x32xf32>
    %cst_10 = arith.constant 0.000000e+00 : f32
    %26 = vector.broadcast %cst_10 : f32 to vector<8x32xf32>
    %27 = arith.maximumf %25, %26 : vector<8x32xf32>
    %c0_11 = arith.constant 0 : index
    %c0_12 = arith.constant 0 : index
    %28 = vector.load %arg4[%c0_11, %c0_12] : memref<32x128xf32, #tpu.memory_space<vmem>>, vector<32x128xf32>
    %cst_13 = arith.constant dense<0.000000e+00> : vector<8x128xf32>
    %29 = tpu.matmul %27, %28, %cst_13 {dimension_numbers = #tpu.dot_dimension_numbers<[1], [0], [0], [1], [0, 0, 1, 1], [], []>} : vector<8x32xf32>, vector<32x128xf32>, vector<8x128xf32> -> vector<8x128xf32>
    %30 = arith.addf %0, %29 : vector<8x128xf32>
    %c0_14 = arith.constant 0 : index
    %c0_15 = arith.constant 0 : index
    %31 = vector.load %arg5[%c0_14, %c0_15] : memref<1x128xf32, #tpu.memory_space<vmem>>, vector<1x128xf32>
    %32 = vector.broadcast %31 : vector<1x128xf32> to vector<8x128xf32>
    %33 = arith.addf %30, %32 : vector<8x128xf32>
    %c0_16 = arith.constant 0 : index
    %c0_17 = arith.constant 0 : index
    %34 = vector.load %arg6[%c0_16, %c0_17] : memref<8x128xf32, #tpu.memory_space<vmem>>, vector<8x128xf32>
    tpu.vector_store %arg6[%c0_16, %c0_17], %33 {strides = array<i32>} : memref<8x128xf32, #tpu.memory_space<vmem>>, vector<8x128xf32>,
    return
  }
  func.func @transform_0(%arg0: i32) -> (i32, i32) {
    %c0_i32 = arith.constant 0 : i32
    %c0_i32_0 = arith.constant 0 : i32
    return %arg0, %c0_i32 : i32, i32
  }
  func.func @transform_1(%arg0: i32) -> (i32, i32) {
    %c0_i32 = arith.constant 0 : i32
    %c0_i32_0 = arith.constant 0 : i32
    %c0_i32_1 = arith.constant 0 : i32
    return %c0_i32, %c0_i32_0 : i32, i32
  }
  func.func @transform_2(%arg0: i32) -> (i32, i32) {
    %c0_i32 = arith.constant 0 : i32
    %c0_i32_0 = arith.constant 0 : i32
    %c0_i32_1 = arith.constant 0 : i32
    return %c0_i32, %c0_i32_0 : i32, i32
  }
  func.func @transform_3(%arg0: i32) -> (i32, i32) {
    %c0_i32 = arith.constant 0 : i32
    %c0_i32_0 = arith.constant 0 : i32
    %c0_i32_1 = arith.constant 0 : i32
    return %c0_i32, %c0_i32_0 : i32, i32
  }
  func.func @transform_4(%arg0: i32) -> (i32, i32) {
    %c0_i32 = arith.constant 0 : i32
    %c0_i32_0 = arith.constant 0 : i32
    %c0_i32_1 = arith.constant 0 : i32
    return %c0_i32, %c0_i32_0 : i32, i32
  }
  func.func @transform_5(%arg0: i32) -> (i32, i32) {
    %c0_i32 = arith.constant 0 : i32
    %c0_i32_0 = arith.constant 0 : i32
    return %arg0, %c0_i32 : i32, i32
  }
}

</mosaic_0001>

<llo_original>
// kernel: tpu_custom_call.1
$region0: #{tpu_custom_call.1}
  #allocation0 [shape = 'u32[]', space=smem, size = 0x4, offset = 0x4, fixed_abs, tag = 'smem constant byte address 0x4 - core index']
  #allocation1 [shape = 'u32[72,128]{1,0:T(1,128)}', space=vmem, size = 0x9000, scoped, tag = 'internal scratch']
  %s0 = inlined_call_operand.vmem [shape: f32[16,128], index: 0, kind: input, shape index: {}]
  %s1 = inlined_call_operand.vmem [shape: f32[128,32], index: 1, kind: input, shape index: {}]
  %s2 = inlined_call_operand.vmem [shape: f32[1,32], index: 2, kind: input, shape index: {}]
  %s3 = inlined_call_operand.vmem [shape: f32[32,128], index: 3, kind: input, shape index: {}]
  %s4 = inlined_call_operand.vmem [shape: f32[1,128], index: 4, kind: input, shape index: {}]
  %s5 = inlined_call_operand.hbm [shape: f32[16,128], index: 5, kind: output, shape index: {}]
  %s6 = sld [smem:[#allocation0]]
  $region53: #{tpu_custom_call.1} parent=0
    _
  %s8 = ssub.s32 1, %s6
  %s9 = scalar_select 0, %s8, %s6
  $region1: #{tpu_custom_call.1} parent=0
    #allocation2 [shape = 'u8[8192]{0}', space=vmem, size = 0x2000, scoped, tag = 'output window, operand 0']
    #allocation3 [shape = 's32[2]{0}', space=sflag, size = 0x8, scoped, tag = 'scoped memory for tpu_custom_call.1']
    %10 = vsyncpa [#allocation3], 0
    %s11 = scalar_lea.sflag [#allocation3], 1
    %12 = vsyncpa %s11, 0
    loop: start=0, step=1, limit=4
    $region2: #{tpu_custom_call.1} parent=1 // loop_pre_header
      _
    $region3: #{tpu_custom_call.1} parent=1 // loop_header
      %s14 = sphi 0, %s18
      %p15 = scmp.ge.s32.totalorder %s14, 4
      %s24 = sphi 0, %s26
      %s27 = sphi 0, %s24
      %s28 = sphi 0, %s27
      %s44 = sphi 0, %s28
      %s48 = sphi 0, %s48
      %s50 = sphi 0, %s48
      %s51 = sphi 0, %s50
      %s65 = sphi 0, %s51
      %s69 = sphi 0, %s69
      %s71 = sphi 0, %s69
      %s72 = sphi 0, %s71
      %s86 = sphi 0, %s72
      %s90 = sphi 0, %s90
      %s92 = sphi 0, %s90
      %s93 = sphi 0, %s92
      %s107 = sphi 0, %s93
      %s111 = sphi 0, %s111
      %s113 = sphi 0, %s111
      %s114 = sphi 0, %s113
      %s128 = sphi 0, %s114
      %s134 = sphi 0, %s136
      %s137 = sphi 0, %s134
      %s138 = sphi 0, %s137
      %s154 = sphi 0, %s138
    $region4: #{tpu_custom_call.1} parent=1 // loop_header_branch
      %17 = sbr.rel (%p15) target = $region8
    $region5: #{tpu_custom_call.1} parent=1 // loop_body
      %s19 = ssub.s32 %s14, 1
      %s20 = ssub.s32 %s14, 2
      %s21 = sadd.s32 %s14, 1
      %s22 = ssub.s32 %s14, %s21
      %p23 = scmp.eq.s32.totalorder %s22, 0
      %s25 = sadd.s32 %s24, 1
      %s26 = scalar_select %p23, %s24, %s25
      %p29 = pneg %p23
      %p30 = scmp.eq.s32.totalorder %s14, 1
      %p31 = por %p29, %p30
      %p32 = scmp.ne.s32.totalorder %s24, %s27
      %p33 = scmp.eq.s32.totalorder %s14, 0
      %p34 = por %p32, %p33
      %p35 = scmp.ne.s32.totalorder %s24, %s27
      %p36 = scmp.eq.s32.totalorder %s19, 1
      %p37 = por %p35, %p36
      %p38 = scmp.ne.s32.totalorder %s27, %s28
      %p39 = scmp.eq.s32.totalorder %s19, 0
      %p40 = por %p38, %p39
      %p41 = scmp.ne.s32.totalorder %s27, %s28
      %p42 = scmp.eq.s32.totalorder %s20, 1
      %p43 = por %p41, %p42
      %p45 = scmp.ne.s32.totalorder %s28, %s44
      %p46 = scmp.eq.s32.totalorder %s20, 0
      %p47 = por %p45, %p46
      %s49 = sadd.s32 %s48, 1
      %p52 = scmp.eq.s32.totalorder %s14, 1
      %p53 = scmp.ne.s32.totalorder %s48, %s50
      %p54 = scmp.eq.s32.totalorder %s14, 0
      %p55 = por %p53, %p54
      %p56 = scmp.ne.s32.totalorder %s48, %s50
      %p57 = scmp.eq.s32.totalorder %s19, 1
      %p58 = por %p56, %p57
      %p59 = scmp.ne.s32.totalorder %s50, %s51
      %p60 = scmp.eq.s32.totalorder %s19, 0
      %p61 = por %p59, %p60
      %p62 = scmp.ne.s32.totalorder %s50, %s51
      %p63 = scmp.eq.s32.totalorder %s20, 1
      %p64 = por %p62, %p63
      %p66 = scmp.ne.s32.totalorder %s51, %s65
      %p67 = scmp.eq.s32.totalorder %s20, 0
      %p68 = por %p66, %p67
      %s70 = sadd.s32 %s69, 1
      %p73 = scmp.eq.s32.totalorder %s14, 1
      %p74 = scmp.ne.s32.totalorder %s69, %s71
      %p75 = scmp.eq.s32.totalorder %s14, 0
      %p76 = por %p74, %p75
      %p77 = scmp.ne.s32.totalorder %s69, %s71
      %p78 = scmp.eq.s32.totalorder %s19, 1
      %p79 = por %p77, %p78
      %p80 = scmp.ne.s32.totalorder %s71, %s72
      %p81 = scmp.eq.s32.totalorder %s19, 0
      %p82 = por %p80, %p81
      %p83 = scmp.ne.s32.totalorder %s71, %s72
      %p84 = scmp.eq.s32.totalorder %s20, 1
      %p85 = por %p83, %p84
      %p87 = scmp.ne.s32.totalorder %s72, %s86
      %p88 = scmp.eq.s32.totalorder %s20, 0
      %p89 = por %p87, %p88
      %s91 = sadd.s32 %s90, 1
      %p94 = scmp.eq.s32.totalorder %s14, 1
      %p95 = scmp.ne.s32.totalorder %s90, %s92
      %p96 = scmp.eq.s32.totalorder %s14, 0
      %p97 = por %p95, %p96
      %p98 = scmp.ne.s32.totalorder %s90, %s92
      %p99 = scmp.eq.s32.totalorder %s19, 1
      %p100 = por %p98, %p99
      %p101 = scmp.ne.s32.totalorder %s92, %s93
      %p102 = scmp.eq.s32.totalorder %s19, 0
      %p103 = por %p101, %p102
      %p104 = scmp.ne.s32.totalorder %s92, %s93
      %p105 = scmp.eq.s32.totalorder %s20, 1
      %p106 = por %p104, %p105
      %p108 = scmp.ne.s32.totalorder %s93, %s107
      %p109 = scmp.eq.s32.totalorder %s20, 0
      %p110 = por %p108, %p109
      %s112 = sadd.s32 %s111, 1
      %p115 = scmp.eq.s32.totalorder %s14, 1
      %p116 = scmp.ne.s32.totalorder %s111, %s113
      %p117 = scmp.eq.s32.totalorder %s14, 0
      %p118 = por %p116, %p117
      %p119 = scmp.ne.s32.totalorder %s111, %s113
      %p120 = scmp.eq.s32.totalorder %s19, 1
      %p121 = por %p119, %p120
      %p122 = scmp.ne.s32.totalorder %s113, %s114
      %p123 = scmp.eq.s32.totalorder %s19, 0
      %p124 = por %p122, %p123
      %p125 = scmp.ne.s32.totalorder %s113, %s114
      %p126 = scmp.eq.s32.totalorder %s20, 1
      %p127 = por %p125, %p126
      %p129 = scmp.ne.s32.totalorder %s114, %s128
      %p130 = scmp.eq.s32.totalorder %s20, 0
      %p131 = por %p129, %p130
      %s132 = ssub.s32 %s14, %s21
      %p133 = scmp.eq.s32.totalorder %s132, 0
      %s135 = sadd.s32 %s134, 1
      %s136 = scalar_select %p133, %s134, %s135
      %p139 = pneg %p133
      %p140 = scmp.eq.s32.totalorder %s14, 1
      %p141 = por %p139, %p140
      %p142 = scmp.ne.s32.totalorder %s134, %s137
      %p143 = scmp.eq.s32.totalorder %s14, 0
      %p144 = por %p142, %p143
      %p145 = scmp.ne.s32.totalorder %s134, %s137
      %p146 = scmp.eq.s32.totalorder %s19, 1
      %p147 = por %p145, %p146
      %p148 = scmp.ne.s32.totalorder %s137, %s138
      %p149 = scmp.eq.s32.totalorder %s19, 0
      %p150 = por %p148, %p149
      %p151 = scmp.ne.s32.totalorder %s137, %s138
      %p152 = scmp.eq.s32.totalorder %s20, 1
      %p153 = por %p151, %p152
      %p155 = scmp.ne.s32.totalorder %s138, %s154
      %p156 = scmp.eq.s32.totalorder %s20, 0
      %p157 = por %p155, %p156
      %p158 = scmp.le.s32.totalorder 1, %s14
      %p159 = scmp.lt.s32.totalorder %s14, 3
      %p160 = pnand %p158, %p159
      %p161 = pneg %p160
      // Predicated region
      $region9: #{tpu_custom_call.1} parent=5 // pred_check
        _
      $region10: #{tpu_custom_call.1} parent=5 // pred_check_branch
        %163 = sbr.rel (%p160) target = $region12
      $region11: #{tpu_custom_call.1} parent=5 // pred_region
        %s164 = ssub.s32 %s14, 1
        // Predicated region
        $region13: #{tpu_custom_call.1} parent=11 // pred_check
          %p165 = pneg %p61
        $region14: #{tpu_custom_call.1} parent=11 // pred_check_branch
          %167 = sbr.rel (%p165) target = $region16
        $region15: #{tpu_custom_call.1} parent=11 // pred_region
          _
        $region16: #{tpu_custom_call.1} parent=11 // pred_fallthru
          _
        // Predicated region
        $region17: #{tpu_custom_call.1} parent=11 // pred_check
          %p168 = pneg %p82
        $region18: #{tpu_custom_call.1} parent=11 // pred_check_branch
          %170 = sbr.rel (%p168) target = $region20
        $region19: #{tpu_custom_call.1} parent=11 // pred_region
          _
        $region20: #{tpu_custom_call.1} parent=11 // pred_fallthru
          _
        // Predicated region
        $region21: #{tpu_custom_call.1} parent=11 // pred_check
          %p171 = pneg %p103
        $region22: #{tpu_custom_call.1} parent=11 // pred_check_branch
          %173 = sbr.rel (%p171) target = $region24
        $region23: #{tpu_custom_call.1} parent=11 // pred_region
          _
        $region24: #{tpu_custom_call.1} parent=11 // pred_fallthru
          _
        // Predicated region
        $region25: #{tpu_custom_call.1} parent=11 // pred_check
          %p174 = pneg %p124
        $region26: #{tpu_custom_call.1} parent=11 // pred_check_branch
          %176 = sbr.rel (%p174) target = $region28
        $region27: #{tpu_custom_call.1} parent=11 // pred_region
          _
        $region28: #{tpu_custom_call.1} parent=11 // pred_fallthru
          _
      $region12: #{tpu_custom_call.1} parent=5 // pred_fallthru
        _
      %p177 = scmp.lt.s32.totalorder %s14, 2
      // Predicated region
      $region29: #{tpu_custom_call.1} parent=5 // pred_check
        %p178 = pneg %p177
      $region30: #{tpu_custom_call.1} parent=5 // pred_check_branch
        %180 = sbr.rel (%p178) target = $region32
      $region31: #{tpu_custom_call.1} parent=5 // pred_region
        // Predicated region
        $region33: #{tpu_custom_call.1} parent=31 // pred_check
          %p181 = pneg %p34
        $region34: #{tpu_custom_call.1} parent=31 // pred_check_branch
          %183 = sbr.rel (%p181) target = $region36
        $region35: #{tpu_custom_call.1} parent=31 // pred_region
          %p184 = scmp.lt.s32.totalorder %s14, 1
          %s185 = scalar_select %p184, %s14, 1
          %s186 = smul.addr %s185, 8
          %s187 = scalar_lea.vmem %s0, %s186
        $region36: #{tpu_custom_call.1} parent=31 // pred_fallthru
          _
      $region32: #{tpu_custom_call.1} parent=5 // pred_fallthru
        _
      %p188 = scmp.le.s32.totalorder 1, %s14
      %p189 = scmp.lt.s32.totalorder %s14, 3
      %p190 = pnand %p188, %p189
      %p191 = pneg %p190
      // Predicated region
      $region37: #{tpu_custom_call.1} parent=5 // pred_check
        _
      $region38: #{tpu_custom_call.1} parent=5 // pred_check_branch
        %193 = sbr.rel (%p190) target = $region40
      $region39: #{tpu_custom_call.1} parent=5 // pred_region
        %s194 = ssub.s32 %s14, 1
        %p195 = scmp.lt.s32.totalorder %s19, 1
        %s196 = scalar_select %p195, %s19, 1
        %s197 = smul.addr %s196, 8
        %s198 = scalar_lea.vmem %s0, %s197
        %p199 = pneg %p40
        %p200 = pneg %p37
        %p201 = pneg %p61
        %p202 = pneg %p58
        %p203 = pneg %p82
        %p204 = pneg %p79
        %p205 = pneg %p103
        %p206 = pneg %p100
        %p207 = pneg %p124
        %p208 = pneg %p121
        %p209 = pneg %p150
        %p210 = pneg %p147
        %s211 = sand.u32 %s137, 1
        %s212 = scalar_lea.sflag [#allocation3], %s211
        %s213 = sand.u32 %s137, 1
        %s214 = smul.addr %s213, 8
        %s215 = scalar_lea.vmem [#allocation2], %s214
        %p216 = scmp.lt.s32.totalorder %s19, 1
        %s217 = scalar_select %p216, %s19, 1
        %s218 = smul.addr %s217, 8
        %s219 = scalar_lea.vmem %s0, %s218
        %v220 = vld [vmem:[%s219] sm:$0xff]
        %221 = vadd.xlane.f32.xlu0 %v220
        %v222 = vpop.xlane.xlu0 %221
        %v223 = vrcp.pop 128.0
        %v224 = vmul.f32 128.0, %v223
        %v225 = vsub.f32 1.0, %v224
        %v226 = vmul.f32 %v223, %v225
        %v227 = vadd.f32 %v223, %v226
        %vm228 = vweird.f32 %v223
        %v229 = vsel %vm228, %v223, %v227
        %v230 = vmul.f32 %v222, %v229
        %v231 = vsub.f32 %v220, %v230
        %v232 = vmul.f32 %v231, %v231
        %233 = vadd.xlane.f32.xlu0 %v232
        %v234 = vpop.xlane.xlu0 %233
        %v235 = vmul.f32 %v234, %v229
        %v236 = vadd.f32 %v235, 1e-05
        %v237 = vrsqrt.pop %v236
        %v238 = vmul.f32 %v237, %v236
        %v239 = vmul.f32 %v238, %v237
        %v240 = vmul.f32 0.5, %v239
        %v241 = vsub.f32 1.5, %v240
        %v242 = vmul.f32 %v237, %v241
        %vm243 = vweird.f32 %v236
        %vm244 = vweird.f32 %v237
        %vm245 = vmor %vm243, %vm244
        %v246 = vsel %vm245, %v237, %v242
        %v247 = vmul.f32 %v231, %v246
        %v248 = vld [vmem:[%s1] sm:$0xff]
        %v249 = vld [vmem:[%s1 + $0x8] sm:$0xff]
        %v250 = vld [vmem:[%s1 + $0x10] sm:$0xff]
        %v251 = vld [vmem:[%s1 + $0x18] sm:$0xff]
        %v252 = vld [vmem:[%s1 + $0x20] sm:$0xff]
        %v253 = vld [vmem:[%s1 + $0x28] sm:$0xff]
        %v254 = vld [vmem:[%s1 + $0x30] sm:$0xff]
        %v255 = vld [vmem:[%s1 + $0x38] sm:$0xff]
        %v256 = vld [vmem:[%s1 + $0x40] sm:$0xff]
        %v257 = vld [vmem:[%s1 + $0x48] sm:$0xff]
        %v258 = vld [vmem:[%s1 + $0x50] sm:$0xff]
        %v259 = vld [vmem:[%s1 + $0x58] sm:$0xff]
        %v260 = vld [vmem:[%s1 + $0x60] sm:$0xff]
        %v261 = vld [vmem:[%s1 + $0x68] sm:$0xff]
        %v262 = vld [vmem:[%s1 + $0x70] sm:$0xff]
        %v263 = vld [vmem:[%s1 + $0x78] sm:$0xff]
        %v264 = vld [vmem:[%s2] sm:$0x1]
        %v266 = vperm.slane %v264, 0
        %268 = vmatpush.msra.mxu0 %v263
        %269 = vmatpush.msra.mxu0 %v262
        %270 = vmatpush.msra.mxu0 %v261
        %271 = vmatpush.msra.mxu0 %v260
        %272 = vmatpush.msra.mxu0 %v259
        %273 = vmatpush.msra.mxu0 %v258
        %274 = vmatpush.msra.mxu0 %v257
        %275 = vmatpush.msra.mxu0 %v256
        %276 = vmatpush.msra.mxu0 %v255
        %277 = vmatpush.msra.mxu0 %v254
        %278 = vmatpush.msra.mxu0 %v253
        %279 = vmatpush.msra.mxu0 %v252
        %280 = vmatpush.msra.mxu0 %v251
        %281 = vmatpush.msra.mxu0 %v250
        %282 = vmatpush.msra.mxu0 %v249
        %283 = vmatpush.msra.mxu0 %v248
        %284 = vmatmul.f32.gmra.mxu0 %v247
        %v285 = vpop.f32.mrf.mxu0
        %v286 = vadd.f32 %v266, %v285
        %287 = vdwg.mxu0
        %v288 = vmax.f32 %v286, 0.0
        %v289 = vld [vmem:[%s3] sm:$0xff]
        %v290 = vld [vmem:[%s3 + $0x8] sm:$0xff]
        %v291 = vld [vmem:[%s3 + $0x10] sm:$0xff]
        %v292 = vld [vmem:[%s3 + $0x18] sm:$0xff]
        %vm293 = vcmask 261120
        %v295 = vsel %vm293, %v288, 0
        %297 = vmatpush.msra.mxu0 0.0
        %298 = vmatpush.msra.mxu0 0.0
        %299 = vmatpush.msra.mxu0 0.0
        %300 = vmatpush.msra.mxu0 0.0
        %301 = vmatpush.msra.mxu0 0.0
        %302 = vmatpush.msra.mxu0 0.0
        %303 = vmatpush.msra.mxu0 0.0
        %304 = vmatpush.msra.mxu0 0.0
        %305 = vmatpush.msra.mxu0 0.0
        %306 = vmatpush.msra.mxu0 0.0
        %307 = vmatpush.msra.mxu0 0.0
        %308 = vmatpush.msra.mxu0 0.0
        %309 = vmatpush.msra.mxu0 %v292
        %310 = vmatpush.msra.mxu0 %v291
        %311 = vmatpush.msra.mxu0 %v290
        %312 = vmatpush.msra.mxu0 %v289
        %313 = vmatmul.f32.gmra.mxu0 %v295
        %v314 = vpop.f32.mrf.mxu0
        %v315 = vadd.f32 0.0, %v314
        %316 = vdwg.mxu0
        %v317 = vadd.f32 %v220, %v315
        %v318 = vld [vmem:[%s4] sm:$0x1]
        %v320 = vperm.slane %v318, 0
        %v322 = vadd.f32 %v317, %v320
        %323 = vst [vmem:[%s215] sm:$0xff] %v322
        %s324 = sand.u32 %s137, 1
        %s325 = scalar_lea.sflag [#allocation3], %s324
        %s326 = sand.u32 %s137, 1
        %s327 = smul.addr %s326, 8
        %s328 = scalar_lea.vmem [#allocation2], %s327
        // Predicated region
        $region41: #{tpu_custom_call.1} parent=39 // pred_check
          %p329 = pneg %p147
        $region42: #{tpu_custom_call.1} parent=39 // pred_check_branch
          %331 = sbr.rel (%p329) target = $region44
        $region43: #{tpu_custom_call.1} parent=39 // pred_region
          %333 = vsyncadd %s325, 0
          %s334 = smul.addr %s19, 8
          %s335 = scalar_lea.hbm %s5, %s334
          %s337 = sshll.u32 %s328, 4
          %s338 = int_to_ptr.vmem [resolvable:$true] %s337
          %s339 = sshll.u32 %s335, 4
          %s340 = int_to_ptr.hbm [resolvable:$true] %s339
          %342 = dma.vmem_to_hbm [thread:$0]  %s338, 128, %s340, %s325
        $region44: #{tpu_custom_call.1} parent=39 // pred_fallthru
          _
      $region40: #{tpu_custom_call.1} parent=5 // pred_fallthru
        _
      %p343 = scmp.le.s32.totalorder 2, %s14
      // Predicated region
      $region45: #{tpu_custom_call.1} parent=5 // pred_check
        %p344 = pneg %p343
      $region46: #{tpu_custom_call.1} parent=5 // pred_check_branch
        %346 = sbr.rel (%p344) target = $region48
      $region47: #{tpu_custom_call.1} parent=5 // pred_region
        %s347 = ssub.s32 %s14, 2
        // Predicated region
        $region49: #{tpu_custom_call.1} parent=47 // pred_check
          %p348 = pneg %p153
        $region50: #{tpu_custom_call.1} parent=47 // pred_check_branch
          %350 = sbr.rel (%p348) target = $region52
        $region51: #{tpu_custom_call.1} parent=47 // pred_region
          %s351 = sand.u32 %s138, 1
          %s352 = scalar_lea.sflag [#allocation3], %s351
          %s353 = sand.u32 %s138, 1
          %s354 = smul.addr %s353, 8
          %s355 = scalar_lea.vmem [#allocation2], %s354
          %357 = dma.done %s352, 128
        $region52: #{tpu_custom_call.1} parent=47 // pred_fallthru
          _
      $region48: #{tpu_custom_call.1} parent=5 // pred_fallthru
        _
    $region6: #{tpu_custom_call.1} parent=1 // loop_footer
      %s18 = sadd.s32 1, %s14
    $region7: #{tpu_custom_call.1} parent=1 // loop_footer_branch
      %13 = sbr.rel target = $region3
    $region8: #{tpu_custom_call.1} parent=1 // loop_exit
      _
    %358 = vsyncpa [#allocation3], 1
    %s359 = scalar_lea.sflag [#allocation3], 1
    %360 = vsyncpa %s359, 1

</llo_original>
